<compile_context>
chip_gen: v5e
topology: v5e:2x2
jax: 0.10.0
libtpu: 0.0.40
codegen_flags: <defaults>
</compile_context>

<pallas_src>
import functools

import jax
import jax.numpy as jnp
from jax import lax
from jax.experimental import pallas as pl
from jax.experimental.pallas import tpu as pltpu

CLASS_ID = 2
LANES = 128
ACC_SUBLANES = 8
CHUNK_ROWS = 128               # in-kernel sub-chunk (keeps values in vregs)
TARGET_TILE_BYTES = 2 << 20    # ~2 MiB per input grid block
NUM_CORES = 2                  # v7x has 2 TensorCores; cheap no-op on v5e/v6e


def _iou_kernel(pred_ref, label_ref, inter_out, union_out,
                inter_acc, union_acc, *,
                block_rows, chunk_rows, acc_rows, total_rows,
                num_blocks, blocks_per_core, need_mask, trunc_labels):
    c = pl.program_id(0)   # "parallel" axis (megacore split)
    i = pl.program_id(1)   # sequential ("arbitrary") axis

    @pl.when(i == 0)
    def _init():
        inter_acc[...] = jnp.zeros_like(inter_acc)
        union_acc[...] = jnp.zeros_like(union_acc)

    logical_block = c * blocks_per_core + i
    n_chunks = block_rows // chunk_rows
    folds = chunk_rows // acc_rows

    def accumulate_chunk(chunk_idx, masked):
        if n_chunks == 1:
            r0 = 0
            pred = pred_ref[...]
            label = label_ref[...]
        else:
            r0 = pl.multiple_of(chunk_idx * chunk_rows, chunk_rows)
            pred = pred_ref[pl.ds(r0, chunk_rows), :]
            label = label_ref[pl.ds(r0, chunk_rows), :]

        if trunc_labels:
            # torch `labels.long()`: truncate-toward-zero cast before comparing.
            label = label.astype(jnp.int32)

        pred_c = pred == CLASS_ID
        label_c = label == CLASS_ID

        if masked:
            # Zero out rows past the true row count (partial tail block and any
            # clamped "phantom" block a core re-reads).
            row_ids = (logical_block * block_rows + r0
                       + lax.broadcasted_iota(jnp.int32, (chunk_rows, LANES), 0))
            valid = row_ids < total_rows
            pred_c = jnp.logical_and(pred_c, valid)
            label_c = jnp.logical_and(label_c, valid)

        inter = jnp.logical_and(pred_c, label_c).astype(jnp.int32)
        union = jnp.logical_or(pred_c, label_c).astype(jnp.int32)
        # Per-lane partial sums: fold sublane groups with pure VPU adds; the
        # cross-lane reduction is deferred to the wrapper.
        inter_acc[...] += inter.reshape(folds, acc_rows, LANES).sum(axis=0)
        union_acc[...] += union.reshape(folds, acc_rows, LANES).sum(axis=0)

    def accumulate_block(masked):
        if n_chunks == 1:
            accumulate_chunk(0, masked)
        else:
            def body(f, carry):
                accumulate_chunk(f, masked)
                return carry
            lax.fori_loop(0, n_chunks, body, 0)

    if need_mask:
        # Only the edge block (last real block / phantom) pays the mask cost.
        is_edge = logical_block >= num_blocks - 1

        @pl.when(is_edge)
        def _masked():
            accumulate_block(True)

        @pl.when(jnp.logical_not(is_edge))
        def _unmasked():
            accumulate_block(False)
    else:
        accumulate_block(False)

    @pl.when(i == pl.num_programs(1) - 1)
    def _finalize():
        inter_out[0] = inter_acc[...]
        union_out[0] = union_acc[...]


def _normalize_pred(x):
    dt = x.dtype
    if dt == jnp.bool_:
        return x.astype(jnp.int32)
    if jnp.issubdtype(dt, jnp.floating):
        return x.astype(jnp.float32) if dt.itemsize > 4 else x
    if jnp.issubdtype(dt, jnp.integer):
        return x.astype(jnp.int32) if dt.itemsize > 4 else x
    return x.astype(jnp.int32)


def _normalize_label(x):
    dt = x.dtype
    if dt == jnp.bool_:
        return x.astype(jnp.int32), False
    if jnp.issubdtype(dt, jnp.floating):
        x = x.astype(jnp.float32) if dt.itemsize > 4 else x
        return x, True   # emulate torch .long() truncation inside the kernel
    if jnp.issubdtype(dt, jnp.integer):
        return (x.astype(jnp.int32) if dt.itemsize > 4 else x), False
    return x.astype(jnp.int32), False


def iou_dec(preds, labels, smooth=1e-6):
    """Pallas equivalent of IOU_Dec.forward: IoU of class_id == 2."""
    preds = _normalize_pred(preds)
    labels, trunc_labels = _normalize_label(labels)

    flat_p = preds.reshape(-1)
    flat_l = labels.reshape(-1)
    n = flat_p.shape[0]

    # Minimal pad only to a lane multiple (<= 127 elements, usually zero).
    # Pad value 0 never equals CLASS_ID so it contributes nothing.
    lane_pad = (-n) % LANES
    if lane_pad:
        flat_p = jnp.pad(flat_p, (0, lane_pad))
        flat_l = jnp.pad(flat_l, (0, lane_pad))

    rows = (n + lane_pad) // LANES
    p2d = flat_p.reshape(rows, LANES)
    l2d = flat_l.reshape(rows, LANES)

    itemsize = max(p2d.dtype.itemsize, l2d.dtype.itemsize)
    max_rows = max(
        CHUNK_ROWS,
        (TARGET_TILE_BYTES // (LANES * itemsize)) // CHUNK_ROWS * CHUNK_ROWS)
    block_rows = rows if rows <= max_rows else max_rows
    chunk_rows = CHUNK_ROWS if block_rows % CHUNK_ROWS == 0 else block_rows
    acc_rows = ACC_SUBLANES if chunk_rows % ACC_SUBLANES == 0 else 1

    num_blocks = pl.cdiv(rows, block_rows)
    blocks_per_core = pl.cdiv(num_blocks, NUM_CORES)
    # Mask only when a partial tail block or a phantom (clamped) block exists.
    need_mask = (rows % block_rows != 0) or (num_blocks % NUM_CORES != 0)

    def in_index_map(c, i):
        # Clamp out-of-range (phantom) block indices onto the last real block;
        # their contribution is zeroed by the in-kernel row mask.
        return (jnp.minimum(c * blocks_per_core + i, num_blocks - 1), 0)

    kernel = functools.partial(
        _iou_kernel,
        block_rows=block_rows,
        chunk_rows=chunk_rows,
        acc_rows=acc_rows,
        total_rows=rows,
        num_blocks=num_blocks,
        blocks_per_core=blocks_per_core,
        need_mask=need_mask,
        trunc_labels=trunc_labels,
    )

    inter_p, union_p = pl.pallas_call(
        kernel,
        out_shape=(
            jax.ShapeDtypeStruct((NUM_CORES, acc_rows, LANES), jnp.int32),
            jax.ShapeDtypeStruct((NUM_CORES, acc_rows, LANES), jnp.int32),
        ),
        grid_spec=pltpu.PrefetchScalarGridSpec(
            num_scalar_prefetch=0,
            grid=(NUM_CORES, blocks_per_core),
            in_specs=[
                pl.BlockSpec((block_rows, LANES), in_index_map),
                pl.BlockSpec((block_rows, LANES), in_index_map),
            ],
            out_specs=[
                pl.BlockSpec((1, acc_rows, LANES), lambda c, i: (c, 0, 0)),
                pl.BlockSpec((1, acc_rows, LANES), lambda c, i: (c, 0, 0)),
            ],
            scratch_shapes=[
                pltpu.VMEM((acc_rows, LANES), jnp.int32),
                pltpu.VMEM((acc_rows, LANES), jnp.int32),
            ],
        ),
        compiler_params=pltpu.CompilerParams(
            dimension_semantics=("parallel", "arbitrary"),
        ),
    )(p2d, l2d)

    # Single tiny cross-lane reduction + IoU division on (2, acc_rows, 128)
    # partials. int32 counts are exact up to ~2.1e9 pixels.
    inter = jnp.sum(inter_p).astype(jnp.float32)
    union = jnp.sum(union_p).astype(jnp.float32)
    return (inter + jnp.float32(smooth)) / (union + jnp.float32(smooth))


def iou_dec_ref(preds, labels, smooth=1e-6):
    """Pure-JAX reference mirroring the torch module."""
    if jnp.issubdtype(labels.dtype, jnp.floating):
        labels = labels.astype(jnp.int32)   # torch labels.long()
    pred_c = preds == CLASS_ID
    label_c = labels == CLASS_ID
    inter = jnp.sum(jnp.logical_and(pred_c, label_c)).astype(jnp.float32)
    union = jnp.sum(jnp.logical_or(pred_c, label_c)).astype(jnp.float32)
    return (inter + smooth) / (union + smooth)


if __name__ == "__main__":
    key = jax.random.PRNGKey(0)
    k1, k2, k3, k4, k5, k6 = jax.random.split(key, 6)

    # Primary small case: batch=2, 16x16 class maps with 4 classes.
    preds = jax.random.randint(k1, (2, 16, 16), 0, 4, dtype=jnp.int32)
    labels = jax.random.randint(k2, (2, 16, 16), 0, 4, dtype=jnp.int32)
    iou = iou_dec(preds, labels)
    jax.block_until_ready(iou)
    ref = iou_dec_ref(preds, labels)
    assert jnp.allclose(iou, ref, rtol=1e-6, atol=1e-6), (iou, ref)

    # Float preds / float labels: exercises the torch `.long()` truncation path
    # plus lane padding and the masked tail block.
    preds_f = jax.random.randint(k3, (2, 3, 17, 19), 0, 4).astype(jnp.float32)
    labels_f = jax.random.randint(k4, (2, 3, 17, 19), 0, 4).astype(jnp.float32) + 0.25
    iou_f = iou_dec(preds_f, labels_f)
    ref_f = iou_dec_ref(preds_f, labels_f)
    assert jnp.allclose(iou_f, ref_f, rtol=1e-6, atol=1e-6), (iou_f, ref_f)

    # Multi-block case: exercises the chunked inner loop, megacore split,
    # clamped phantom block and partial-tail masking.
    preds_b = jax.random.randint(k5, (2, 3, 300, 301), 0, 4, dtype=jnp.int32)
    labels_b = jax.random.randint(k6, (2, 3, 300, 301), 0, 4, dtype=jnp.int32)
    iou_b = iou_dec(preds_b, labels_b)
    ref_b = iou_dec_ref(preds_b, labels_b)
    assert jnp.allclose(iou_b, ref_b, rtol=1e-6, atol=1e-6), (iou_b, ref_b)

    jax.block_until_ready((iou, iou_f, iou_b))
    print("KERNEL_OK")
</pallas_src>

<mosaic_0001>
module attributes {stable_mosaic.version = 11 : i64} {
  func.func @_iou_kernel(%arg0: i32, %arg1: i32, %arg2: memref<4x128xi32, #tpu.memory_space<vmem>>, %arg3: memref<4x128xi32, #tpu.memory_space<vmem>>, %arg4: memref<1x1x128xi32, #tpu.memory_space<vmem>>, %arg5: memref<1x1x128xi32, #tpu.memory_space<vmem>>, %arg6: memref<1x128xi32, #tpu.memory_space<vmem>>, %arg7: memref<1x128xi32, #tpu.memory_space<vmem>>) attributes {dimension_semantics = [#tpu.dimension_semantics<parallel>, #tpu.dimension_semantics<arbitrary>], iteration_bounds = array<i64: 2, 1>, scalar_prefetch = 0 : i64, scratch_operands = 2 : i64, tpu.core_type = #tpu.core_type<tc>, window_params = [{transform_indices = @transform_0, window_bounds = array<i64: 4, 128>}, {transform_indices = @transform_1, window_bounds = array<i64: 4, 128>}, {transform_indices = @transform_2, window_bounds = array<i64: 1, 1, 128>}, {transform_indices = @transform_3, window_bounds = array<i64: 1, 1, 128>}]} {
    %c0_i32 = arith.constant 0 : i32
    %0 = arith.cmpi eq, %arg1, %c0_i32 : i32
    %1 = arith.extui %0 : i1 to i32
    %c0_i32_0 = arith.constant 0 : i32
    %2 = arith.cmpi ne, %1, %c0_i32_0 : i32
    scf.if %2 {
      %c0_i32_6 = arith.constant 0 : i32
      %14 = vector.broadcast %c0_i32_6 : i32 to vector<1x128xi32>
      %c0 = arith.constant 0 : index
      %c0_7 = arith.constant 0 : index
      %15 = vector.load %arg6[%c0, %c0_7] : memref<1x128xi32, #tpu.memory_space<vmem>>, vector<1x128xi32>
      tpu.vector_store %arg6[%c0, %c0_7], %14 {strides = array<i32>} : memref<1x128xi32, #tpu.memory_space<vmem>>, vector<1x128xi32>,
      %c0_i32_8 = arith.constant 0 : i32
      %16 = vector.broadcast %c0_i32_8 : i32 to vector<1x128xi32>
      %c0_9 = arith.constant 0 : index
      %c0_10 = arith.constant 0 : index
      %17 = vector.load %arg7[%c0_9, %c0_10] : memref<1x128xi32, #tpu.memory_space<vmem>>, vector<1x128xi32>
      tpu.vector_store %arg7[%c0_9, %c0_10], %16 {strides = array<i32>} : memref<1x128xi32, #tpu.memory_space<vmem>>, vector<1x128xi32>,
    } else {
    }
    %c1_i32 = arith.constant 1 : i32
    %3 = arith.muli %arg0, %c1_i32 : i32
    %4 = arith.addi %3, %arg1 : i32
    %c0_i32_1 = arith.constant 0 : i32
    %5 = arith.cmpi sge, %4, %c0_i32_1 : i32
    %6 = arith.extui %5 : i1 to i32
    %c0_i32_2 = arith.constant 0 : i32
    %7 = arith.cmpi ne, %6, %c0_i32_2 : i32
    scf.if %7 {
      %c0 = arith.constant 0 : index
      %c0_6 = arith.constant 0 : index
      %14 = vector.load %arg2[%c0, %c0_6] : memref<4x128xi32, #tpu.memory_space<vmem>>, vector<4x128xi32>
      %c0_7 = arith.constant 0 : index
      %c0_8 = arith.constant 0 : index
      %15 = vector.load %arg3[%c0_7, %c0_8] : memref<4x128xi32, #tpu.memory_space<vmem>>, vector<4x128xi32>
      %c2_i32 = arith.constant 2 : i32
      %16 = vector.broadcast %c2_i32 : i32 to vector<4x128xi32>
      %17 = arith.cmpi eq, %14, %16 : vector<4x128xi32>
      %c2_i32_9 = arith.constant 2 : i32
      %18 = vector.broadcast %c2_i32_9 : i32 to vector<4x128xi32>
      %19 = arith.cmpi eq, %15, %18 : vector<4x128xi32>
      %c4_i32 = arith.constant 4 : i32
      %20 = arith.muli %4, %c4_i32 : i32
      %c0_i32_10 = arith.constant 0 : i32
      %21 = arith.addi %20, %c0_i32_10 : i32
      %22 = tpu.iota {dimensions = array<i32: 0>} : vector<4x128xi32>
      %23 = vector.broadcast %21 : i32 to vector<4x128xi32>
      %24 = arith.addi %23, %22 : vector<4x128xi32>
      %c4_i32_11 = arith.constant 4 : i32
      %25 = vector.broadcast %c4_i32_11 : i32 to vector<4x128xi32>
      %26 = arith.cmpi slt, %24, %25 : vector<4x128xi32>
      %27 = arith.andi %17, %26 : vector<4x128xi1>
      %28 = arith.andi %19, %26 : vector<4x128xi1>
      %29 = arith.andi %27, %28 : vector<4x128xi1>
      %30 = arith.extui %29 : vector<4x128xi1> to vector<4x128xi32>
      %31 = arith.ori %27, %28 : vector<4x128xi1>
      %32 = arith.extui %31 : vector<4x128xi1> to vector<4x128xi32>
      %c0_12 = arith.constant 0 : index
      %c0_13 = arith.constant 0 : index
      %33 = vector.load %arg6[%c0_12, %c0_13] : memref<1x128xi32, #tpu.memory_space<vmem>>, vector<1x128xi32>
      %34 = vector.shape_cast %30 : vector<4x128xi32> to vector<4x1x128xi32>
      %cst = arith.constant dense<0> : vector<1x128xi32>
      %35 = vector.multi_reduction <add>, %34, %cst [0] : vector<4x1x128xi32> to vector<1x128xi32>
      %36 = arith.addi %33, %35 : vector<1x128xi32>
      %c0_14 = arith.constant 0 : index
      %c0_15 = arith.constant 0 : index
      %37 = vector.load %arg6[%c0_14, %c0_15] : memref<1x128xi32, #tpu.memory_space<vmem>>, vector<1x128xi32>
      tpu.vector_store %arg6[%c0_14, %c0_15], %36 {strides = array<i32>} : memref<1x128xi32, #tpu.memory_space<vmem>>, vector<1x128xi32>,
      %c0_16 = arith.constant 0 : index
      %c0_17 = arith.constant 0 : index
      %38 = vector.load %arg7[%c0_16, %c0_17] : memref<1x128xi32, #tpu.memory_space<vmem>>, vector<1x128xi32>
      %39 = vector.shape_cast %32 : vector<4x128xi32> to vector<4x1x128xi32>
      %cst_18 = arith.constant dense<0> : vector<1x128xi32>
      %40 = vector.multi_reduction <add>, %39, %cst_18 [0] : vector<4x1x128xi32> to vector<1x128xi32>
      %41 = arith.addi %38, %40 : vector<1x128xi32>
      %c0_19 = arith.constant 0 : index
      %c0_20 = arith.constant 0 : index
      %42 = vector.load %arg7[%c0_19, %c0_20] : memref<1x128xi32, #tpu.memory_space<vmem>>, vector<1x128xi32>
      tpu.vector_store %arg7[%c0_19, %c0_20], %41 {strides = array<i32>} : memref<1x128xi32, #tpu.memory_space<vmem>>, vector<1x128xi32>,
    } else {
    }
    %true = arith.constant true
    %8 = arith.xori %5, %true : i1
    %9 = arith.extui %8 : i1 to i32
    %c0_i32_3 = arith.constant 0 : i32
    %10 = arith.cmpi ne, %9, %c0_i32_3 : i32
    scf.if %10 {
      %c0 = arith.constant 0 : index
      %c0_6 = arith.constant 0 : index
      %14 = vector.load %arg2[%c0, %c0_6] : memref<4x128xi32, #tpu.memory_space<vmem>>, vector<4x128xi32>
      %c0_7 = arith.constant 0 : index
      %c0_8 = arith.constant 0 : index
      %15 = vector.load %arg3[%c0_7, %c0_8] : memref<4x128xi32, #tpu.memory_space<vmem>>, vector<4x128xi32>
      %c2_i32 = arith.constant 2 : i32
      %16 = vector.broadcast %c2_i32 : i32 to vector<4x128xi32>
      %17 = arith.cmpi eq, %14, %16 : vector<4x128xi32>
      %c2_i32_9 = arith.constant 2 : i32
      %18 = vector.broadcast %c2_i32_9 : i32 to vector<4x128xi32>
      %19 = arith.cmpi eq, %15, %18 : vector<4x128xi32>
      %20 = arith.andi %17, %19 : vector<4x128xi1>
      %21 = arith.extui %20 : vector<4x128xi1> to vector<4x128xi32>
      %22 = arith.ori %17, %19 : vector<4x128xi1>
      %23 = arith.extui %22 : vector<4x128xi1> to vector<4x128xi32>
      %c0_10 = arith.constant 0 : index
      %c0_11 = arith.constant 0 : index
      %24 = vector.load %arg6[%c0_10, %c0_11] : memref<1x128xi32, #tpu.memory_space<vmem>>, vector<1x128xi32>
      %25 = vector.shape_cast %21 : vector<4x128xi32> to vector<4x1x128xi32>
      %cst = arith.constant dense<0> : vector<1x128xi32>
      %26 = vector.multi_reduction <add>, %25, %cst [0] : vector<4x1x128xi32> to vector<1x128xi32>
      %27 = arith.addi %24, %26 : vector<1x128xi32>
      %c0_12 = arith.constant 0 : index
      %c0_13 = arith.constant 0 : index
      %28 = vector.load %arg6[%c0_12, %c0_13] : memref<1x128xi32, #tpu.memory_space<vmem>>, vector<1x128xi32>
      tpu.vector_store %arg6[%c0_12, %c0_13], %27 {strides = array<i32>} : memref<1x128xi32, #tpu.memory_space<vmem>>, vector<1x128xi32>,
      %c0_14 = arith.constant 0 : index
      %c0_15 = arith.constant 0 : index
      %29 = vector.load %arg7[%c0_14, %c0_15] : memref<1x128xi32, #tpu.memory_space<vmem>>, vector<1x128xi32>
      %30 = vector.shape_cast %23 : vector<4x128xi32> to vector<4x1x128xi32>
      %cst_16 = arith.constant dense<0> : vector<1x128xi32>
      %31 = vector.multi_reduction <add>, %30, %cst_16 [0] : vector<4x1x128xi32> to vector<1x128xi32>
      %32 = arith.addi %29, %31 : vector<1x128xi32>
      %c0_17 = arith.constant 0 : index
      %c0_18 = arith.constant 0 : index
      %33 = vector.load %arg7[%c0_17, %c0_18] : memref<1x128xi32, #tpu.memory_space<vmem>>, vector<1x128xi32>
      tpu.vector_store %arg7[%c0_17, %c0_18], %32 {strides = array<i32>} : memref<1x128xi32, #tpu.memory_space<vmem>>, vector<1x128xi32>,
    } else {
    }
    %c0_i32_4 = arith.constant 0 : i32
    %11 = arith.cmpi eq, %arg1, %c0_i32_4 : i32
    %12 = arith.extui %11 : i1 to i32
    %c0_i32_5 = arith.constant 0 : i32
    %13 = arith.cmpi ne, %12, %c0_i32_5 : i32
    scf.if %13 {
      %c0 = arith.constant 0 : index
      %c0_6 = arith.constant 0 : index
      %14 = vector.load %arg6[%c0, %c0_6] : memref<1x128xi32, #tpu.memory_space<vmem>>, vector<1x128xi32>
      %c0_7 = arith.constant 0 : index
      %c0_8 = arith.constant 0 : index
      %c0_9 = arith.constant 0 : index
      %15 = vector.load %arg4[%c0_7, %c0_8, %c0_9] : memref<1x1x128xi32, #tpu.memory_space<vmem>>, vector<1x1x128xi32>
      %16 = vector.shape_cast %15 : vector<1x1x128xi32> to vector<1x128xi32>
      %17 = vector.shape_cast %14 : vector<1x128xi32> to vector<1x1x128xi32>
      tpu.vector_store %arg4[%c0_7, %c0_8, %c0_9], %17 {strides = array<i32>} : memref<1x1x128xi32, #tpu.memory_space<vmem>>, vector<1x1x128xi32>,
      %c0_10 = arith.constant 0 : index
      %c0_11 = arith.constant 0 : index
      %18 = vector.load %arg7[%c0_10, %c0_11] : memref<1x128xi32, #tpu.memory_space<vmem>>, vector<1x128xi32>
      %c0_12 = arith.constant 0 : index
      %c0_13 = arith.constant 0 : index
      %c0_14 = arith.constant 0 : index
      %19 = vector.load %arg5[%c0_12, %c0_13, %c0_14] : memref<1x1x128xi32, #tpu.memory_space<vmem>>, vector<1x1x128xi32>
      %20 = vector.shape_cast %19 : vector<1x1x128xi32> to vector<1x128xi32>
      %21 = vector.shape_cast %18 : vector<1x128xi32> to vector<1x1x128xi32>
      tpu.vector_store %arg5[%c0_12, %c0_13, %c0_14], %21 {strides = array<i32>} : memref<1x1x128xi32, #tpu.memory_space<vmem>>, vector<1x1x128xi32>,
    } else {
    }
    return
  }
  func.func @transform_0(%arg0: i32, %arg1: i32) -> (i32, i32) {
    %c1_i32 = arith.constant 1 : i32
    %0 = arith.muli %arg0, %c1_i32 : i32
    %1 = arith.addi %0, %arg1 : i32
    %c0_i32 = arith.constant 0 : i32
    %2 = arith.minsi %1, %c0_i32 : i32
    %c0_i32_0 = arith.constant 0 : i32
    %c0_i32_1 = arith.constant 0 : i32
    return %2, %c0_i32_0 : i32, i32
  }
  func.func @transform_1(%arg0: i32, %arg1: i32) -> (i32, i32) {
    %c1_i32 = arith.constant 1 : i32
    %0 = arith.muli %arg0, %c1_i32 : i32
    %1 = arith.addi %0, %arg1 : i32
    %c0_i32 = arith.constant 0 : i32
    %2 = arith.minsi %1, %c0_i32 : i32
    %c0_i32_0 = arith.constant 0 : i32
    %c0_i32_1 = arith.constant 0 : i32
    return %2, %c0_i32_0 : i32, i32
  }
  func.func @transform_2(%arg0: i32, %arg1: i32) -> (i32, i32, i32) {
    %c0_i32 = arith.constant 0 : i32
    %c0_i32_0 = arith.constant 0 : i32
    %c0_i32_1 = arith.constant 0 : i32
    return %arg0, %c0_i32, %c0_i32_0 : i32, i32, i32
  }
  func.func @transform_3(%arg0: i32, %arg1: i32) -> (i32, i32, i32) {
    %c0_i32 = arith.constant 0 : i32
    %c0_i32_0 = arith.constant 0 : i32
    %c0_i32_1 = arith.constant 0 : i32
    return %arg0, %c0_i32, %c0_i32_0 : i32, i32, i32
  }
}

</mosaic_0001>

<llo_original>
// kernel: tpu_custom_call.1
$region0: #{tpu_custom_call.1}
  #allocation0 [shape = 'u32[]', space=smem, size = 0x4, offset = 0x4, fixed_abs, tag = 'smem constant byte address 0x4 - core index']
  #allocation1 [shape = 'u32[72,128]{1,0:T(1,128)}', space=vmem, size = 0x9000, scoped, tag = 'internal scratch']
  #allocation2 [shape = 's32[1,128]{1,0:T(1,128)}', space=vmem, size = 0x200, scoped, tag = 'scratch operand']
  #allocation3 [shape = 's32[1,128]{1,0:T(1,128)}', space=vmem, size = 0x200, scoped, tag = 'scratch operand']
  %s0 = inlined_call_operand.hbm [shape: s32[4,128], index: 0, kind: input, shape index: {}]
  %s1 = inlined_call_operand.hbm [shape: s32[4,128], index: 1, kind: input, shape index: {}]
  %s2 = inlined_call_operand.hbm [shape: s32[2,1,128], index: 2, kind: output, shape index: {0}]
  %s3 = inlined_call_operand.hbm [shape: s32[2,1,128], index: 3, kind: output, shape index: {1}]
  %4 = xla_tuple %s2, %s3
  %s5 = sld [smem:[#allocation0]]
  $region73: #{tpu_custom_call.1} parent=0
    _
  %s7 = ssub.s32 1, %s5
  %s8 = scalar_select 0, %s7, %s5
  $region1: #{tpu_custom_call.1} parent=0
    #allocation4 [shape = 'u8[4096]{0}', space=vmem, size = 0x1000, scoped, tag = 'input window, operand 0']
    #allocation5 [shape = 's32[2]{0}', space=sflag, size = 0x8, scoped, tag = 'scoped memory for tpu_custom_call.1']
    #allocation6 [shape = 's32[2]{0}', space=sflag, size = 0x8, scoped, tag = 'scoped memory for tpu_custom_call.1']
    #allocation7 [shape = 'u8[4096]{0}', space=vmem, size = 0x1000, scoped, tag = 'input window, operand 1']
    #allocation8 [shape = 's32[2]{0}', space=sflag, size = 0x8, scoped, tag = 'scoped memory for tpu_custom_call.1']
    #allocation9 [shape = 'u8[1024]{0}', space=vmem, size = 0x400, scoped, tag = 'output window, operand 0']
    #allocation10 [shape = 'u8[1024]{0}', space=vmem, size = 0x400, scoped, tag = 'output window, operand 1']
    #allocation11 [shape = 's32[2]{0}', space=sflag, size = 0x8, scoped, tag = 'scoped memory for tpu_custom_call.1']
    %9 = vsyncpa [#allocation5], 0
    %s10 = scalar_lea.sflag [#allocation5], 1
    %11 = vsyncpa %s10, 0
    %12 = vsyncpa [#allocation8], 0
    %s13 = scalar_lea.sflag [#allocation8], 1
    %14 = vsyncpa %s13, 0
    %15 = vsyncpa [#allocation6], 0
    %s16 = scalar_lea.sflag [#allocation6], 1
    %17 = vsyncpa %s16, 0
    %18 = vsyncpa [#allocation11], 0
    %s19 = scalar_lea.sflag [#allocation11], 1
    %20 = vsyncpa %s19, 0
    loop: start=0, step=1, limit=4
    $region2: #{tpu_custom_call.1} parent=1 // loop_pre_header
      _
    $region3: #{tpu_custom_call.1} parent=1 // loop_header
      %s22 = sphi 0, %s26
      %p23 = scmp.ge.s32.totalorder %s22, 4
      %s29 = sphi 0, %s41
      %s30 = sphi 0, %s37
      %s31 = sphi 0, %s29
      %s32 = sphi 0, %s30
      %s33 = sphi 0, %s31
      %s34 = sphi 0, %s32
      %s50 = sphi 0, %s52
      %s53 = sphi 0, %s50
      %s54 = sphi 0, %s53
      %s70 = sphi 0, %s54
      %s82 = sphi 0, %s84
      %s85 = sphi 0, %s82
      %s86 = sphi 0, %s85
      %s102 = sphi 0, %s86
      %s108 = sphi 0, %s110
      %s111 = sphi 0, %s108
      %s112 = sphi 0, %s111
      %s128 = sphi 0, %s112
      %s134 = sphi 0, %s136
      %s137 = sphi 0, %s134
      %s138 = sphi 0, %s137
      %s154 = sphi 0, %s138
    $region4: #{tpu_custom_call.1} parent=1 // loop_header_branch
      %25 = sbr.rel (%p23) target = $region8
    $region5: #{tpu_custom_call.1} parent=1 // loop_body
      %s27 = ssub.s32 %s22, 1
      %s28 = ssub.s32 %s22, 2
      %s35 = sadd.s32 1, %s30
      %p36 = scmp.ge.s32.totalorder %s35, 1
      %s37 = scalar_select %p36, 0, %s35
      %s38 = sadd.s32 1, %s29
      %s39 = scalar_select %p36, %s38, %s29
      %p40 = scmp.ge.s32.totalorder %s39, 2
      %s41 = scalar_select %p40, 0, %s39
      %s42 = sadd.s32 %s29, %s30
      %p43 = scmp.lt.s32.totalorder %s42, 0
      %s44 = scalar_select %p43, %s42, 0
      %s45 = sadd.s32 %s41, %s37
      %p46 = scmp.lt.s32.totalorder %s45, 0
      %s47 = scalar_select %p46, %s45, 0
      %s48 = ssub.s32 %s44, %s47
      %p49 = scmp.eq.s32.totalorder %s48, 0
      %s51 = sadd.s32 %s50, 1
      %s52 = scalar_select %p49, %s50, %s51
      %p55 = pneg %p49
      %p56 = scmp.eq.s32.totalorder %s22, 1
      %p57 = por %p55, %p56
      %p58 = scmp.ne.s32.totalorder %s50, %s53
      %p59 = scmp.eq.s32.totalorder %s22, 0
      %p60 = por %p58, %p59
      %p61 = scmp.ne.s32.totalorder %s50, %s53
      %p62 = scmp.eq.s32.totalorder %s27, 1
      %p63 = por %p61, %p62
      %p64 = scmp.ne.s32.totalorder %s53, %s54
      %p65 = scmp.eq.s32.totalorder %s27, 0
      %p66 = por %p64, %p65
      %p67 = scmp.ne.s32.totalorder %s53, %s54
      %p68 = scmp.eq.s32.totalorder %s28, 1
      %p69 = por %p67, %p68
      %p71 = scmp.ne.s32.totalorder %s54, %s70
      %p72 = scmp.eq.s32.totalorder %s28, 0
      %p73 = por %p71, %p72
      %s74 = sadd.s32 %s29, %s30
      %p75 = scmp.lt.s32.totalorder %s74, 0
      %s76 = scalar_select %p75, %s74, 0
      %s77 = sadd.s32 %s41, %s37
      %p78 = scmp.lt.s32.totalorder %s77, 0
      %s79 = scalar_select %p78, %s77, 0
      %s80 = ssub.s32 %s76, %s79
      %p81 = scmp.eq.s32.totalorder %s80, 0
      %s83 = sadd.s32 %s82, 1
      %s84 = scalar_select %p81, %s82, %s83
      %p87 = pneg %p81
      %p88 = scmp.eq.s32.totalorder %s22, 1
      %p89 = por %p87, %p88
      %p90 = scmp.ne.s32.totalorder %s82, %s85
      %p91 = scmp.eq.s32.totalorder %s22, 0
      %p92 = por %p90, %p91
      %p93 = scmp.ne.s32.totalorder %s82, %s85
      %p94 = scmp.eq.s32.totalorder %s27, 1
      %p95 = por %p93, %p94
      %p96 = scmp.ne.s32.totalorder %s85, %s86
      %p97 = scmp.eq.s32.totalorder %s27, 0
      %p98 = por %p96, %p97
      %p99 = scmp.ne.s32.totalorder %s85, %s86
      %p100 = scmp.eq.s32.totalorder %s28, 1
      %p101 = por %p99, %p100
      %p103 = scmp.ne.s32.totalorder %s86, %s102
      %p104 = scmp.eq.s32.totalorder %s28, 0
      %p105 = por %p103, %p104
      %s106 = ssub.s32 %s29, %s41
      %p107 = scmp.eq.s32.totalorder %s106, 0
      %s109 = sadd.s32 %s108, 1
      %s110 = scalar_select %p107, %s108, %s109
      %p113 = pneg %p107
      %p114 = scmp.eq.s32.totalorder %s22, 1
      %p115 = por %p113, %p114
      %p116 = scmp.ne.s32.totalorder %s108, %s111
      %p117 = scmp.eq.s32.totalorder %s22, 0
      %p118 = por %p116, %p117
      %p119 = scmp.ne.s32.totalorder %s108, %s111
      %p120 = scmp.eq.s32.totalorder %s27, 1
      %p121 = por %p119, %p120
      %p122 = scmp.ne.s32.totalorder %s111, %s112
      %p123 = scmp.eq.s32.totalorder %s27, 0
      %p124 = por %p122, %p123
      %p125 = scmp.ne.s32.totalorder %s111, %s112
      %p126 = scmp.eq.s32.totalorder %s28, 1
      %p127 = por %p125, %p126
      %p129 = scmp.ne.s32.totalorder %s112, %s128
      %p130 = scmp.eq.s32.totalorder %s28, 0
      %p131 = por %p129, %p130
      %s132 = ssub.s32 %s29, %s41
      %p133 = scmp.eq.s32.totalorder %s132, 0
      %s135 = sadd.s32 %s134, 1
      %s136 = scalar_select %p133, %s134, %s135
      %p139 = pneg %p133
      %p140 = scmp.eq.s32.totalorder %s22, 1
      %p141 = por %p139, %p140
      %p142 = scmp.ne.s32.totalorder %s134, %s137
      %p143 = scmp.eq.s32.totalorder %s22, 0
      %p144 = por %p142, %p143
      %p145 = scmp.ne.s32.totalorder %s134, %s137
      %p146 = scmp.eq.s32.totalorder %s27, 1
      %p147 = por %p145, %p146
      %p148 = scmp.ne.s32.totalorder %s137, %s138
      %p149 = scmp.eq.s32.totalorder %s27, 0
      %p150 = por %p148, %p149
      %p151 = scmp.ne.s32.totalorder %s137, %s138
      %p152 = scmp.eq.s32.totalorder %s28, 1
      %p153 = por %p151, %p152
      %p155 = scmp.ne.s32.totalorder %s138, %s154
      %p156 = scmp.eq.s32.totalorder %s28, 0
      %p157 = por %p155, %p156
      %p158 = scmp.le.s32.totalorder 1, %s22
      %p159 = scmp.lt.s32.totalorder %s22, 3
      %p160 = pnand %p158, %p159
      %p161 = pneg %p160
      // Predicated region
      $region9: #{tpu_custom_call.1} parent=5 // pred_check
        _
      $region10: #{tpu_custom_call.1} parent=5 // pred_check_branch
        %163 = sbr.rel (%p160) target = $region12
      $region11: #{tpu_custom_call.1} parent=5 // pred_region
        %s164 = ssub.s32 %s22, 1
      $region12: #{tpu_custom_call.1} parent=5 // pred_fallthru
        _
      %p165 = scmp.lt.s32.totalorder %s22, 2
      // Predicated region
      $region13: #{tpu_custom_call.1} parent=5 // pred_check
        %p166 = pneg %p165
      $region14: #{tpu_custom_call.1} parent=5 // pred_check_branch
        %168 = sbr.rel (%p166) target = $region16
      $region15: #{tpu_custom_call.1} parent=5 // pred_region
        // Predicated region
        $region17: #{tpu_custom_call.1} parent=15 // pred_check
          %p169 = pneg %p60
        $region18: #{tpu_custom_call.1} parent=15 // pred_check_branch
          %171 = sbr.rel (%p169) target = $region20
        $region19: #{tpu_custom_call.1} parent=15 // pred_region
          %s172 = sand.u32 %s50, 1
          %s173 = scalar_lea.sflag [#allocation5], %s172
          %s174 = sand.u32 %s50, 1
          %s175 = smul.addr %s174, 4
          %s176 = scalar_lea.vmem [#allocation4], %s175
          %s177 = sadd.s32 %s29, %s30
          %p178 = scmp.lt.s32.totalorder %s177, 0
          %s179 = scalar_select %p178, %s177, 0
          %181 = vsyncadd %s173, 0
          %s182 = smul.addr %s179, 4
          %s183 = scalar_lea.hbm %s0, %s182
          %s185 = sshll.u32 %s183, 4
          %s186 = int_to_ptr.hbm [resolvable:$true] %s185
          %s187 = sshll.u32 %s176, 4
          %s188 = int_to_ptr.vmem [resolvable:$true] %s187
          %190 = dma.hbm_to_vmem [thread:$0]  %s186, 64, %s188, %s173
        $region20: #{tpu_custom_call.1} parent=15 // pred_fallthru
          _
        // Predicated region
        $region21: #{tpu_custom_call.1} parent=15 // pred_check
          %p191 = pneg %p92
        $region22: #{tpu_custom_call.1} parent=15 // pred_check_branch
          %193 = sbr.rel (%p191) target = $region24
        $region23: #{tpu_custom_call.1} parent=15 // pred_region
          %s194 = sand.u32 %s82, 1
          %s195 = scalar_lea.sflag [#allocation8], %s194
          %s196 = sand.u32 %s82, 1
          %s197 = smul.addr %s196, 4
          %s198 = scalar_lea.vmem [#allocation7], %s197
          %s199 = sadd.s32 %s29, %s30
          %p200 = scmp.lt.s32.totalorder %s199, 0
          %s201 = scalar_select %p200, %s199, 0
          %203 = vsyncadd %s195, 0
          %s204 = smul.addr %s201, 4
          %s205 = scalar_lea.hbm %s1, %s204
          %s207 = sshll.u32 %s205, 4
          %s208 = int_to_ptr.hbm [resolvable:$true] %s207
          %s209 = sshll.u32 %s198, 4
          %s210 = int_to_ptr.vmem [resolvable:$true] %s209
          %212 = dma.hbm_to_vmem [thread:$0]  %s208, 64, %s210, %s195
        $region24: #{tpu_custom_call.1} parent=15 // pred_fallthru
          _
      $region16: #{tpu_custom_call.1} parent=5 // pred_fallthru
        _
      %p213 = scmp.le.s32.totalorder 1, %s22
      %p214 = scmp.lt.s32.totalorder %s22, 3
      %p215 = pnand %p213, %p214
      %p216 = pneg %p215
      // Predicated region
      $region25: #{tpu_custom_call.1} parent=5 // pred_check
        _
      $region26: #{tpu_custom_call.1} parent=5 // pred_check_branch
        %218 = sbr.rel (%p215) target = $region28
      $region27: #{tpu_custom_call.1} parent=5 // pred_region
        %s219 = ssub.s32 %s22, 1
        %s220 = sand.u32 %s53, 1
        %s221 = scalar_lea.sflag [#allocation5], %s220
        %s222 = sand.u32 %s53, 1
        %s223 = smul.addr %s222, 4
        %s224 = scalar_lea.vmem [#allocation4], %s223
        // Predicated region
        $region29: #{tpu_custom_call.1} parent=27 // pred_check
          %p225 = pneg %p66
        $region30: #{tpu_custom_call.1} parent=27 // pred_check_branch
          %227 = sbr.rel (%p225) target = $region32
        $region31: #{tpu_custom_call.1} parent=27 // pred_region
          %229 = dma.done %s221, 64
        $region32: #{tpu_custom_call.1} parent=27 // pred_fallthru
          _
        %s230 = sand.u32 %s85, 1
        %s231 = scalar_lea.sflag [#allocation8], %s230
        %s232 = sand.u32 %s85, 1
        %s233 = smul.addr %s232, 4
        %s234 = scalar_lea.vmem [#allocation7], %s233
        // Predicated region
        $region33: #{tpu_custom_call.1} parent=27 // pred_check
          %p235 = pneg %p98
        $region34: #{tpu_custom_call.1} parent=27 // pred_check_branch
          %237 = sbr.rel (%p235) target = $region36
        $region35: #{tpu_custom_call.1} parent=27 // pred_region
          %239 = dma.done %s231, 64
        $region36: #{tpu_custom_call.1} parent=27 // pred_fallthru
          _
        %s240 = sand.u32 %s53, 1
        %s241 = scalar_lea.sflag [#allocation5], %s240
        %s242 = sand.u32 %s53, 1
        %s243 = smul.addr %s242, 4
        %s244 = scalar_lea.vmem [#allocation4], %s243
        %p245 = pneg %p66
        %p246 = pneg %p63
        %s247 = sand.u32 %s85, 1
        %s248 = scalar_lea.sflag [#allocation8], %s247
        %s249 = sand.u32 %s85, 1
        %s250 = smul.addr %s249, 4
        %s251 = scalar_lea.vmem [#allocation7], %s250
        %p252 = pneg %p98
        %p253 = pneg %p95
        %p254 = pneg %p124
        %p255 = pneg %p121
        %s256 = sand.u32 %s111, 1
        %s257 = scalar_lea.sflag [#allocation6], %s256
        %s258 = sand.u32 %s111, 1
        %s259 = scalar_lea.vmem [#allocation9], %s258
        %p260 = pneg %p150
        %p261 = pneg %p147
        %s262 = sand.u32 %s137, 1
        %s263 = scalar_lea.sflag [#allocation11], %s262
        %s264 = sand.u32 %s137, 1
        %s265 = scalar_lea.vmem [#allocation10], %s264
        %s266 = sadd.s32 %s31, %s32
        %p267 = scmp.lt.s32.totalorder %s266, 0
        %s268 = scalar_select %p267, %s266, 0
        %s269 = sadd.s32 %s31, %s32
        %p270 = scmp.lt.s32.totalorder %s269, 0
        %s271 = scalar_select %p270, %s269, 0
        %p272 = scmp.eq.s32.totalorder %s32, 0
        // Predicated region
        $region37: #{tpu_custom_call.1} parent=27 // pred_check
          %p273 = pneg %p272
        $region38: #{tpu_custom_call.1} parent=27 // pred_check_branch
          %275 = sbr.rel (%p273) target = $region40
        $region39: #{tpu_custom_call.1} parent=27 // pred_region
          %276 = vst [vmem:[#allocation2] sm:$0x1] 0
          %277 = vst [vmem:[#allocation3] sm:$0x1] 0
        $region40: #{tpu_custom_call.1} parent=27 // pred_fallthru
          _
        %s278 = sadd.s32 %s31, %s32
        %p279 = scmp.ge.s32.totalorder %s278, 0
        // Predicated region
        $region41: #{tpu_custom_call.1} parent=27 // pred_check
          %p280 = pneg %p279
        $region42: #{tpu_custom_call.1} parent=27 // pred_check_branch
          %282 = sbr.rel (%p280) target = $region44
        $region43: #{tpu_custom_call.1} parent=27 // pred_region
          %v283 = vld [vmem:[%s224] sm:$0xf]
          %v284 = vld [vmem:[%s234] sm:$0xf]
          %vm285 = vcmp.eq.s32.totalorder %v283, 2
          %vm286 = vcmp.eq.s32.totalorder %v284, 2
          %s287 = smul.u32 %s278, 4
          %v288 = vlaneseq
          %v289 = vshrl.u32 %v288, 7
          %v290 = vstv %s287
          %v291 = vadd.s32 %v290, %v289
          %vm292 = vcmp.lt.s32.totalorder %v291, 4
          %vm293 = vmand %vm285, %vm292
          %vm294 = vmand %vm286, %vm292
          %vm295 = vmand %vm293, %vm294
          %v296 = vsel %vm295, 1, 0
          %vm297 = vmor %vm293, %vm294
          %v298 = vsel %vm297, 1, 0
          %v299 = vld [vmem:[#allocation2] sm:$0x1]
          %v300 = vrot.slane %v296, 1
          %v301 = vrot.slane %v296, 2
          %v302 = vrot.slane %v296, 3
          %v303 = vlaneseq
          %vm304 = vcmp.ge.s32.totalorder %v303, 0
          %vm305 = vcmp.lt.s32.totalorder %v303, 128
          %vm306 = vmand %vm304, %vm305
          %v307 = vsel %vm306, %v296, 0
          %v308 = vsel %vm306, %v300, 0
          %v309 = vsel %vm306, %v301, 0
          %v310 = vsel %vm306, %v302, 0
          %v311 = vadd.s32 %v307, %v308
          %v312 = vadd.s32 %v309, %v310
          %v313 = vadd.s32 %v311, %v312
          %v314 = vadd.s32 %v299, %v313
          %315 = vst [vmem:[#allocation2] sm:$0x1] %v314
          %v316 = vld [vmem:[#allocation3] sm:$0x1]
          %v317 = vrot.slane %v298, 1
          %v318 = vrot.slane %v298, 2
          %v319 = vrot.slane %v298, 3
          %v320 = vsel %vm306, %v298, 0
          %v321 = vsel %vm306, %v317, 0
          %v322 = vsel %vm306, %v318, 0
          %v323 = vsel %vm306, %v319, 0
          %v324 = vadd.s32 %v320, %v321
          %v325 = vadd.s32 %v322, %v323
          %v326 = vadd.s32 %v324, %v325
          %v327 = vadd.s32 %v316, %v326
          %328 = vst [vmem:[#allocation3] sm:$0x1] %v327
        $region44: #{tpu_custom_call.1} parent=27 // pred_fallthru
          _
        %p329 = scmp.lt.s32.totalorder %s278, 0
        // Predicated region
        $region45: #{tpu_custom_call.1} parent=27 // pred_check
          %p330 = pneg %p329
        $region46: #{tpu_custom_call.1} parent=27 // pred_check_branch
          %332 = sbr.rel (%p330) target = $region48
        $region47: #{tpu_custom_call.1} parent=27 // pred_region
          %v333 = vld [vmem:[%s224] sm:$0xf]
          %v334 = vld [vmem:[%s234] sm:$0xf]
          %vm335 = vcmp.eq.s32.totalorder %v333, 2
          %vm336 = vcmp.eq.s32.totalorder %v334, 2
          %vm337 = vmand %vm335, %vm336
          %v338 = vsel %vm337, 1, 0
          %vm339 = vmor %vm335, %vm336
          %v340 = vsel %vm339, 1, 0
          %v341 = vld [vmem:[#allocation2] sm:$0x1]
          %v342 = vrot.slane %v338, 1
          %v343 = vrot.slane %v338, 2
          %v344 = vrot.slane %v338, 3
          %v345 = vlaneseq
          %vm346 = vcmp.ge.s32.totalorder %v345, 0
          %vm347 = vcmp.lt.s32.totalorder %v345, 128
          %vm348 = vmand %vm346, %vm347
          %v349 = vsel %vm348, %v338, 0
          %v350 = vsel %vm348, %v342, 0
          %v351 = vsel %vm348, %v343, 0
          %v352 = vsel %vm348, %v344, 0
          %v353 = vadd.s32 %v349, %v350
          %v354 = vadd.s32 %v351, %v352
          %v355 = vadd.s32 %v353, %v354
          %v356 = vadd.s32 %v341, %v355
          %357 = vst [vmem:[#allocation2] sm:$0x1] %v356
          %v358 = vld [vmem:[#allocation3] sm:$0x1]
          %v359 = vrot.slane %v340, 1
          %v360 = vrot.slane %v340, 2
          %v361 = vrot.slane %v340, 3
          %v362 = vsel %vm348, %v340, 0
          %v363 = vsel %vm348, %v359, 0
          %v364 = vsel %vm348, %v360, 0
          %v365 = vsel %vm348, %v361, 0
          %v366 = vadd.s32 %v362, %v363
          %v367 = vadd.s32 %v364, %v365
          %v368 = vadd.s32 %v366, %v367
          %v369 = vadd.s32 %v358, %v368
          %370 = vst [vmem:[#allocation3] sm:$0x1] %v369
        $region48: #{tpu_custom_call.1} parent=27 // pred_fallthru
          _
        // Predicated region
        $region49: #{tpu_custom_call.1} parent=27 // pred_check
          %p371 = pneg %p272
        $region50: #{tpu_custom_call.1} parent=27 // pred_check_branch
          %373 = sbr.rel (%p371) target = $region52
        $region51: #{tpu_custom_call.1} parent=27 // pred_region
          %v374 = vld [vmem:[#allocation2] sm:$0x1]
          %375 = vst [vmem:[%s259] sm:$0x1] %v374
          %v376 = vld [vmem:[#allocation3] sm:$0x1]
          %377 = vst [vmem:[%s265] sm:$0x1] %v376
        $region52: #{tpu_custom_call.1} parent=27 // pred_fallthru
          _
        %s378 = sand.u32 %s111, 1
        %s379 = scalar_lea.sflag [#allocation6], %s378
        %s380 = sand.u32 %s111, 1
        %s381 = scalar_lea.vmem [#allocation9], %s380
        %s382 = sand.u32 %s137, 1
        %s383 = scalar_lea.sflag [#allocation11], %s382
        %s384 = sand.u32 %s137, 1
        %s385 = scalar_lea.vmem [#allocation10], %s384
        // Predicated region
        $region53: #{tpu_custom_call.1} parent=27 // pred_check
          %p386 = pneg %p121
        $region54: #{tpu_custom_call.1} parent=27 // pred_check_branch
          %388 = sbr.rel (%p386) target = $region56
        $region55: #{tpu_custom_call.1} parent=27 // pred_region
          %390 = vsyncadd %s379, 0
          %s391 = scalar_lea.hbm %s2, %s31
          %s393 = sshll.u32 %s381, 4
          %s394 = int_to_ptr.vmem [resolvable:$true] %s393
          %s395 = sshll.u32 %s391, 4
          %s396 = int_to_ptr.hbm [resolvable:$true] %s395
          %398 = dma.vmem_to_hbm [thread:$0]  %s394, 16, %s396, %s379
        $region56: #{tpu_custom_call.1} parent=27 // pred_fallthru
          _
        // Predicated region
        $region57: #{tpu_custom_call.1} parent=27 // pred_check
          %p399 = pneg %p147
        $region58: #{tpu_custom_call.1} parent=27 // pred_check_branch
          %401 = sbr.rel (%p399) target = $region60
        $region59: #{tpu_custom_call.1} parent=27 // pred_region
          %403 = vsyncadd %s383, 0
          %s404 = scalar_lea.hbm %s3, %s31
          %s406 = sshll.u32 %s385, 4
          %s407 = int_to_ptr.vmem [resolvable:$true] %s406
          %s408 = sshll.u32 %s404, 4
          %s409 = int_to_ptr.hbm [resolvable:$true] %s408
          %411 = dma.vmem_to_hbm [thread:$0]  %s407, 16, %s409, %s383
        $region60: #{tpu_custom_call.1} parent=27 // pred_fallthru
          _
      $region28: #{tpu_custom_call.1} parent=5 // pred_fallthru
        _
      %p412 = scmp.le.s32.totalorder 2, %s22
      // Predicated region
      $region61: #{tpu_custom_call.1} parent=5 // pred_check
        %p413 = pneg %p412
      $region62: #{tpu_custom_call.1} parent=5 // pred_check_branch
        %415 = sbr.rel (%p413) target = $region64
      $region63: #{tpu_custom_call.1} parent=5 // pred_region
        %s416 = ssub.s32 %s22, 2
        // Predicated region
        $region65: #{tpu_custom_call.1} parent=63 // pred_check
          %p417 = pneg %p127
        $region66: #{tpu_custom_call.1} parent=63 // pred_check_branch
          %419 = sbr.rel (%p417) target = $region68
        $region67: #{tpu_custom_call.1} parent=63 // pred_region
          %s420 = sand.u32 %s112, 1
          %s421 = scalar_lea.sflag [#allocation6], %s420
          %s422 = sand.u32 %s112, 1
          %s423 = scalar_lea.vmem [#allocation9], %s422
          %425 = dma.done %s421, 16
        $region68: #{tpu_custom_call.1} parent=63 // pred_fallthru
          _
        // Predicated region
        $region69: #{tpu_custom_call.1} parent=63 // pred_check
          %p426 = pneg %p153
        $region70: #{tpu_custom_call.1} parent=63 // pred_check_branch
          %428 = sbr.rel (%p426) target = $region72
        $region71: #{tpu_custom_call.1} parent=63 // pred_region
          %s429 = sand.u32 %s138, 1
          %s430 = scalar_lea.sflag [#allocation11], %s429
          %s431 = sand.u32 %s138, 1
          %s432 = scalar_lea.vmem [#allocation10], %s431
          %434 = dma.done %s430, 16
        $region72: #{tpu_custom_call.1} parent=63 // pred_fallthru
          _
      $region64: #{tpu_custom_call.1} parent=5 // pred_fallthru
        _
    $region6: #{tpu_custom_call.1} parent=1 // loop_footer
      %s26 = sadd.s32 1, %s22
    $region7: #{tpu_custom_call.1} parent=1 // loop_footer_branch
      %21 = sbr.rel target = $region3
    $region8: #{tpu_custom_call.1} parent=1 // loop_exit
      _
    %435 = vsyncpa [#allocation5], 1
    %s436 = scalar_lea.sflag [#allocation5], 1
    %437 = vsyncpa %s436, 1
    %438 = vsyncpa [#allocation8], 1
    %s439 = scalar_lea.sflag [#allocation8], 1
    %440 = vsyncpa %s439, 1
    %441 = vsyncpa [#allocation6], 1
    %s442 = scalar_lea.sflag [#allocation6], 1
    %443 = vsyncpa %s442, 1
    %444 = vsyncpa [#allocation11], 1
    %s445 = scalar_lea.sflag [#allocation11], 1
    %446 = vsyncpa %s445, 1

</llo_original>
